<compile_context>
chip_gen: v6e
topology: v6e:2x2x1
jax: 0.10.0
libtpu: 0.0.40
codegen_flags: <defaults>
</compile_context>

<pallas_src>
import functools

import jax
import jax.numpy as jnp
from jax.experimental import pallas as pl
from jax.experimental.pallas import tpu as pltpu

_HID = 128
_IN_PAD = 8   # 5 input features zero-padded to 8
_OUT = 4      # fused heads: [mean(2) | std(2)]


def _stock_net_kernel(x_ref,
                      w1_ref, b1_ref,
                      w2_ref, b2_ref,
                      w3_ref, b3_ref,
                      wh_ref, bh_ref,
                      out_ref):
    """Fused 3x(Linear+ReLU) + fused mean/std head for one batch tile."""
    x = x_ref[...]                                                    # (TB, 8) bf16

    h = jnp.dot(x, w1_ref[...], preferred_element_type=jnp.float32) + b1_ref[...]
    h = jnp.maximum(h, 0.0)

    h = jnp.dot(h.astype(jnp.bfloat16), w2_ref[...],
                preferred_element_type=jnp.float32) + b2_ref[...]
    h = jnp.maximum(h, 0.0)

    h = jnp.dot(h.astype(jnp.bfloat16), w3_ref[...],
                preferred_element_type=jnp.float32) + b3_ref[...]
    h = jnp.maximum(h, 0.0)

    heads = jnp.dot(h.astype(jnp.bfloat16), wh_ref[...],
                    preferred_element_type=jnp.float32) + bh_ref[...]  # (TB, 4)

    # Columns 0:2 -> mean (identity); columns 2:4 -> std = exp(logits).
    col = jax.lax.broadcasted_iota(jnp.int32, heads.shape, dimension=1)
    out = jnp.where(col >= 2, jnp.exp(heads), heads)
    out_ref[...] = out.astype(out_ref.dtype)


def _round_up(n, m):
    return (n + m - 1) // m * m


@functools.partial(jax.jit, static_argnames=("block_rows",))
def stock_network_forward(x, params, *, block_rows=1024):
    """x: (B, 5) float32. Returns (mean (B,2), std (B,2)) float32."""
    B, F = x.shape

    # --- wrapper-side layout plumbing ---
    xp = jnp.pad(x, ((0, 0), (0, _IN_PAD - F)))                   # (B, 8)
    w1 = jnp.pad(params["w1"], ((0, _IN_PAD - F), (0, 0)))        # (8, 128)
    wh = jnp.concatenate([params["wm"], params["ws"]], axis=1)    # (128, 4)
    bh = jnp.concatenate([params["bm"], params["bs"]], axis=1)    # (1, 4)

    tb = min(block_rows, _round_up(B, 8))
    padded_b = _round_up(B, tb)
    if padded_b != B:
        xp = jnp.pad(xp, ((0, padded_b - B), (0, 0)))

    # bf16 MXU operands; biases stay f32 (VPU work remains f32 inside the kernel).
    to_bf16 = lambda a: a.astype(jnp.bfloat16)
    xp = to_bf16(xp)
    w1, w2, w3, wh = map(to_bf16, (w1, params["w2"], params["w3"], wh))
    b1, b2, b3 = params["b1"], params["b2"], params["b3"]

    const = lambda i: (0, 0)   # weights/biases resident across grid steps
    grid = (padded_b // tb,)

    weight_bytes = sum(int(a.size) * a.dtype.itemsize
                       for a in (w1, b1, w2, b2, w3, b3, wh, bh))
    cost = pl.CostEstimate(
        flops=2 * padded_b * (_IN_PAD * _HID + 2 * _HID * _HID + _HID * _OUT),
        transcendentals=2 * padded_b,
        bytes_accessed=padded_b * (_IN_PAD * 2 + _OUT * 4) + weight_bytes,
    )

    out = pl.pallas_call(
        _stock_net_kernel,
        out_shape=jax.ShapeDtypeStruct((padded_b, _OUT), jnp.float32),
        grid=grid,
        in_specs=[
            pl.BlockSpec((tb, _IN_PAD), lambda i: (i, 0)),   # x tile (pipelined)
            pl.BlockSpec(w1.shape, const),
            pl.BlockSpec(b1.shape, const),
            pl.BlockSpec(w2.shape, const),
            pl.BlockSpec(b2.shape, const),
            pl.BlockSpec(w3.shape, const),
            pl.BlockSpec(b3.shape, const),
            pl.BlockSpec(wh.shape, const),
            pl.BlockSpec(bh.shape, const),
        ],
        out_specs=pl.BlockSpec((tb, _OUT), lambda i: (i, 0)),
        compiler_params=pltpu.CompilerParams(
            dimension_semantics=("parallel",)),
        cost_estimate=cost,
    )(xp, w1, b1, w2, b2, w3, b3, wh, bh)

    out = out[:B]
    return out[:, 0:2], out[:, 2:4]


def init_params(key):
    """Deterministic init mimicking nn.Linear (stored transposed: (in, out))."""
    def linear(k, fan_in, fan_out):
        kw, kb = jax.random.split(k)
        bound = 1.0 / jnp.sqrt(fan_in)
        w = jax.random.uniform(kw, (fan_in, fan_out), jnp.float32, -bound, bound)
        b = jax.random.uniform(kb, (1, fan_out), jnp.float32, -bound, bound)
        return w, b

    k1, k2, k3, k4, k5 = jax.random.split(key, 5)
    w1, b1 = linear(k1, 5, _HID)
    w2, b2 = linear(k2, _HID, _HID)
    w3, b3 = linear(k3, _HID, _HID)
    wm, bm = linear(k4, _HID, 2)
    ws, bs = linear(k5, _HID, 2)
    return dict(w1=w1, b1=b1, w2=w2, b2=b2, w3=w3, b3=b3,
                wm=wm, bm=bm, ws=ws, bs=bs)


def reference_forward_f32(x, p):
    h = jnp.maximum(x @ p["w1"] + p["b1"], 0.0)
    h = jnp.maximum(h @ p["w2"] + p["b2"], 0.0)
    h = jnp.maximum(h @ p["w3"] + p["b3"], 0.0)
    return h @ p["wm"] + p["bm"], jnp.exp(h @ p["ws"] + p["bs"])


def reference_forward_bf16(x, p):
    bf = lambda a: a.astype(jnp.bfloat16)
    dot = lambda a, w: jnp.dot(bf(a), bf(w), preferred_element_type=jnp.float32)
    h = jnp.maximum(dot(x, p["w1"]) + p["b1"], 0.0)
    h = jnp.maximum(dot(h, p["w2"]) + p["b2"], 0.0)
    h = jnp.maximum(dot(h, p["w3"]) + p["b3"], 0.0)
    return dot(h, p["wm"]) + p["bm"], jnp.exp(dot(h, p["ws"]) + p["bs"])


def _check(x, params):
    mean, std = jax.block_until_ready(stock_network_forward(x, params))
    B = x.shape[0]
    assert mean.shape == (B, 2) and std.shape == (B, 2)
    rm16, rs16 = reference_forward_bf16(x, params)
    rm32, rs32 = reference_forward_f32(x, params)
    assert jnp.allclose(mean, rm16, atol=2e-3, rtol=2e-3)
    assert jnp.allclose(std, rs16, atol=2e-3, rtol=2e-3)
    assert jnp.allclose(mean, rm32, atol=5e-2, rtol=5e-2)
    assert jnp.allclose(std, rs32, atol=5e-2, rtol=5e-2)
    assert bool(jnp.all(std > 0))


if __name__ == "__main__":
    key = jax.random.PRNGKey(0)
    k_params, k_x1, k_x2 = jax.random.split(key, 3)
    params = init_params(k_params)

    # Small batch (single grid step).
    x_small = jax.random.normal(k_x1, (8, 5), dtype=jnp.float32)
    _check(x_small, params)

    # Larger, non-multiple batch: exercises multi-step grid + row padding.
    x_big = jax.random.normal(k_x2, (2600, 5), dtype=jnp.float32)
    _check(x_big, params)

    print("KERNEL_OK")
</pallas_src>

<mosaic_0001>
module attributes {stable_mosaic.version = 11 : i64} {
  func.func @_stock_net_kernel(%arg0: i32, %arg1: memref<8x8xbf16, #tpu.memory_space<vmem>>, %arg2: memref<8x128xbf16, #tpu.memory_space<vmem>>, %arg3: memref<1x128xf32, #tpu.memory_space<vmem>>, %arg4: memref<128x128xbf16, #tpu.memory_space<vmem>>, %arg5: memref<1x128xf32, #tpu.memory_space<vmem>>, %arg6: memref<128x128xbf16, #tpu.memory_space<vmem>>, %arg7: memref<1x128xf32, #tpu.memory_space<vmem>>, %arg8: memref<128x4xbf16, #tpu.memory_space<vmem>>, %arg9: memref<1x4xf32, #tpu.memory_space<vmem>>, %arg10: memref<8x4xf32, #tpu.memory_space<vmem>>) attributes {dimension_semantics = [#tpu.dimension_semantics<parallel>], iteration_bounds = array<i64: 1>, scalar_prefetch = 0 : i64, scratch_operands = 0 : i64, tpu.core_type = #tpu.core_type<tc>, window_params = [{transform_indices = @transform_0, window_bounds = array<i64: 8, 8>}, {pipeline_mode = #tpu.pipeline_mode<synchronous>, transform_indices = @transform_1, window_bounds = array<i64: 8, 128>}, {pipeline_mode = #tpu.pipeline_mode<synchronous>, transform_indices = @transform_2, window_bounds = array<i64: 1, 128>}, {pipeline_mode = #tpu.pipeline_mode<synchronous>, transform_indices = @transform_3, window_bounds = array<i64: 128, 128>}, {pipeline_mode = #tpu.pipeline_mode<synchronous>, transform_indices = @transform_4, window_bounds = array<i64: 1, 128>}, {pipeline_mode = #tpu.pipeline_mode<synchronous>, transform_indices = @transform_5, window_bounds = array<i64: 128, 128>}, {pipeline_mode = #tpu.pipeline_mode<synchronous>, transform_indices = @transform_6, window_bounds = array<i64: 1, 128>}, {pipeline_mode = #tpu.pipeline_mode<synchronous>, transform_indices = @transform_7, window_bounds = array<i64: 128, 4>}, {pipeline_mode = #tpu.pipeline_mode<synchronous>, transform_indices = @transform_8, window_bounds = array<i64: 1, 4>}, {transform_indices = @transform_9, window_bounds = array<i64: 8, 4>}]} {
    %c0 = arith.constant 0 : index
    %c0_0 = arith.constant 0 : index
    %0 = vector.load %arg1[%c0, %c0_0] : memref<8x8xbf16, #tpu.memory_space<vmem>>, vector<8x8xbf16>
    %c0_1 = arith.constant 0 : index
    %c0_2 = arith.constant 0 : index
    %1 = vector.load %arg2[%c0_1, %c0_2] : memref<8x128xbf16, #tpu.memory_space<vmem>>, vector<8x128xbf16>
    %cst = arith.constant dense<0.000000e+00> : vector<8x128xf32>
    %2 = tpu.matmul %0, %1, %cst {dimension_numbers = #tpu.dot_dimension_numbers<[1], [0], [0], [1], [0, 0, 1, 1], [], []>} : vector<8x8xbf16>, vector<8x128xbf16>, vector<8x128xf32> -> vector<8x128xf32>
    %c0_3 = arith.constant 0 : index
    %c0_4 = arith.constant 0 : index
    %3 = vector.load %arg3[%c0_3, %c0_4] : memref<1x128xf32, #tpu.memory_space<vmem>>, vector<1x128xf32>
    %4 = vector.broadcast %3 : vector<1x128xf32> to vector<8x128xf32>
    %5 = arith.addf %2, %4 : vector<8x128xf32>
    %cst_5 = arith.constant 0.000000e+00 : f32
    %6 = vector.broadcast %cst_5 : f32 to vector<8x128xf32>
    %7 = arith.maximumf %5, %6 : vector<8x128xf32>
    %8 = arith.truncf %7 : vector<8x128xf32> to vector<8x128xbf16>
    %c0_6 = arith.constant 0 : index
    %c0_7 = arith.constant 0 : index
    %9 = vector.load %arg4[%c0_6, %c0_7] : memref<128x128xbf16, #tpu.memory_space<vmem>>, vector<128x128xbf16>
    %cst_8 = arith.constant dense<0.000000e+00> : vector<8x128xf32>
    %10 = tpu.matmul %8, %9, %cst_8 {dimension_numbers = #tpu.dot_dimension_numbers<[1], [0], [0], [1], [0, 0, 1, 1], [], []>} : vector<8x128xbf16>, vector<128x128xbf16>, vector<8x128xf32> -> vector<8x128xf32>
    %c0_9 = arith.constant 0 : index
    %c0_10 = arith.constant 0 : index
    %11 = vector.load %arg5[%c0_9, %c0_10] : memref<1x128xf32, #tpu.memory_space<vmem>>, vector<1x128xf32>
    %12 = vector.broadcast %11 : vector<1x128xf32> to vector<8x128xf32>
    %13 = arith.addf %10, %12 : vector<8x128xf32>
    %cst_11 = arith.constant 0.000000e+00 : f32
    %14 = vector.broadcast %cst_11 : f32 to vector<8x128xf32>
    %15 = arith.maximumf %13, %14 : vector<8x128xf32>
    %16 = arith.truncf %15 : vector<8x128xf32> to vector<8x128xbf16>
    %c0_12 = arith.constant 0 : index
    %c0_13 = arith.constant 0 : index
    %17 = vector.load %arg6[%c0_12, %c0_13] : memref<128x128xbf16, #tpu.memory_space<vmem>>, vector<128x128xbf16>
    %cst_14 = arith.constant dense<0.000000e+00> : vector<8x128xf32>
    %18 = tpu.matmul %16, %17, %cst_14 {dimension_numbers = #tpu.dot_dimension_numbers<[1], [0], [0], [1], [0, 0, 1, 1], [], []>} : vector<8x128xbf16>, vector<128x128xbf16>, vector<8x128xf32> -> vector<8x128xf32>
    %c0_15 = arith.constant 0 : index
    %c0_16 = arith.constant 0 : index
    %19 = vector.load %arg7[%c0_15, %c0_16] : memref<1x128xf32, #tpu.memory_space<vmem>>, vector<1x128xf32>
    %20 = vector.broadcast %19 : vector<1x128xf32> to vector<8x128xf32>
    %21 = arith.addf %18, %20 : vector<8x128xf32>
    %cst_17 = arith.constant 0.000000e+00 : f32
    %22 = vector.broadcast %cst_17 : f32 to vector<8x128xf32>
    %23 = arith.maximumf %21, %22 : vector<8x128xf32>
    %24 = arith.truncf %23 : vector<8x128xf32> to vector<8x128xbf16>
    %c0_18 = arith.constant 0 : index
    %c0_19 = arith.constant 0 : index
    %25 = vector.load %arg8[%c0_18, %c0_19] : memref<128x4xbf16, #tpu.memory_space<vmem>>, vector<128x4xbf16>
    %cst_20 = arith.constant dense<0.000000e+00> : vector<8x4xf32>
    %26 = tpu.matmul %24, %25, %cst_20 {dimension_numbers = #tpu.dot_dimension_numbers<[1], [0], [0], [1], [0, 0, 1, 1], [], []>} : vector<8x128xbf16>, vector<128x4xbf16>, vector<8x4xf32> -> vector<8x4xf32>
    %c0_21 = arith.constant 0 : index
    %c0_22 = arith.constant 0 : index
    %27 = vector.load %arg9[%c0_21, %c0_22] : memref<1x4xf32, #tpu.memory_space<vmem>>, vector<1x4xf32>
    %28 = vector.broadcast %27 : vector<1x4xf32> to vector<8x4xf32>
    %29 = arith.addf %26, %28 : vector<8x4xf32>
    %30 = tpu.iota {dimensions = array<i32: 1>} : vector<8x4xi32>
    %c2_i32 = arith.constant 2 : i32
    %31 = vector.broadcast %c2_i32 : i32 to vector<8x4xi32>
    %32 = arith.cmpi sge, %30, %31 : vector<8x4xi32>
    %33 = math.exp %29 : vector<8x4xf32>
    %34 = arith.select %32, %33, %29 : vector<8x4xi1>, vector<8x4xf32>
    %c0_23 = arith.constant 0 : index
    %c0_24 = arith.constant 0 : index
    %35 = vector.load %arg10[%c0_23, %c0_24] : memref<8x4xf32, #tpu.memory_space<vmem>>, vector<8x4xf32>
    tpu.vector_store %arg10[%c0_23, %c0_24], %34 {strides = array<i32>} : memref<8x4xf32, #tpu.memory_space<vmem>>, vector<8x4xf32>,
    return
  }
  func.func @transform_0(%arg0: i32) -> (i32, i32) {
    %c0_i32 = arith.constant 0 : i32
    %c0_i32_0 = arith.constant 0 : i32
    return %arg0, %c0_i32 : i32, i32
  }
  func.func @transform_1(%arg0: i32) -> (i32, i32) {
    %c0_i32 = arith.constant 0 : i32
    %c0_i32_0 = arith.constant 0 : i32
    %c0_i32_1 = arith.constant 0 : i32
    return %c0_i32, %c0_i32_0 : i32, i32
  }
  func.func @transform_2(%arg0: i32) -> (i32, i32) {
    %c0_i32 = arith.constant 0 : i32
    %c0_i32_0 = arith.constant 0 : i32
    %c0_i32_1 = arith.constant 0 : i32
    return %c0_i32, %c0_i32_0 : i32, i32
  }
  func.func @transform_3(%arg0: i32) -> (i32, i32) {
    %c0_i32 = arith.constant 0 : i32
    %c0_i32_0 = arith.constant 0 : i32
    %c0_i32_1 = arith.constant 0 : i32
    return %c0_i32, %c0_i32_0 : i32, i32
  }
  func.func @transform_4(%arg0: i32) -> (i32, i32) {
    %c0_i32 = arith.constant 0 : i32
    %c0_i32_0 = arith.constant 0 : i32
    %c0_i32_1 = arith.constant 0 : i32
    return %c0_i32, %c0_i32_0 : i32, i32
  }
  func.func @transform_5(%arg0: i32) -> (i32, i32) {
    %c0_i32 = arith.constant 0 : i32
    %c0_i32_0 = arith.constant 0 : i32
    %c0_i32_1 = arith.constant 0 : i32
    return %c0_i32, %c0_i32_0 : i32, i32
  }
  func.func @transform_6(%arg0: i32) -> (i32, i32) {
    %c0_i32 = arith.constant 0 : i32
    %c0_i32_0 = arith.constant 0 : i32
    %c0_i32_1 = arith.constant 0 : i32
    return %c0_i32, %c0_i32_0 : i32, i32
  }
  func.func @transform_7(%arg0: i32) -> (i32, i32) {
    %c0_i32 = arith.constant 0 : i32
    %c0_i32_0 = arith.constant 0 : i32
    %c0_i32_1 = arith.constant 0 : i32
    return %c0_i32, %c0_i32_0 : i32, i32
  }
  func.func @transform_8(%arg0: i32) -> (i32, i32) {
    %c0_i32 = arith.constant 0 : i32
    %c0_i32_0 = arith.constant 0 : i32
    %c0_i32_1 = arith.constant 0 : i32
    return %c0_i32, %c0_i32_0 : i32, i32
  }
  func.func @transform_9(%arg0: i32) -> (i32, i32) {
    %c0_i32 = arith.constant 0 : i32
    %c0_i32_0 = arith.constant 0 : i32
    return %arg0, %c0_i32 : i32, i32
  }
}

</mosaic_0001>

<llo_original>
// kernel: stock_network_forward.1
$region0: #{stock_network_forward.1}
  #allocation0 [shape = 'u32[]', space=smem, size = 0x4, offset = 0x4, fixed_abs, tag = 'smem constant byte address 0x4 - core index']
  #allocation1 [shape = 'u32[144,128]{1,0:T(1,128)}', space=vmem, size = 0x12000, scoped, tag = 'internal scratch']
  %s0 = inlined_call_operand.vmem [shape: bf16[8,8], index: 0, kind: input, shape index: {}]
  %s1 = inlined_call_operand.vmem [shape: bf16[8,128], index: 1, kind: input, shape index: {}]
  %s2 = inlined_call_operand.vmem [shape: f32[1,128], index: 2, kind: input, shape index: {}]
  %s3 = inlined_call_operand.vmem [shape: bf16[128,128], index: 3, kind: input, shape index: {}]
  %s4 = inlined_call_operand.vmem [shape: f32[1,128], index: 4, kind: input, shape index: {}]
  %s5 = inlined_call_operand.vmem [shape: bf16[128,128], index: 5, kind: input, shape index: {}]
  %s6 = inlined_call_operand.vmem [shape: f32[1,128], index: 6, kind: input, shape index: {}]
  %s7 = inlined_call_operand.vmem [shape: bf16[128,4], index: 7, kind: input, shape index: {}]
  %s8 = inlined_call_operand.vmem [shape: f32[1,4], index: 8, kind: input, shape index: {}]
  %s9 = inlined_call_operand.vmem [shape: f32[8,4], index: 9, kind: output, shape index: {}]
  %s10 = sld [smem:[#allocation0]]
  $region46: #{stock_network_forward.1} parent=0
    _
  %s12 = ssub.s32 1, %s10
  %s13 = scalar_select 0, %s12, %s10
  // Predicated region
  $region2: #{stock_network_forward.1} parent=0 // pred_check
    _
  $region3: #{stock_network_forward.1} parent=0 // pred_check_branch
    %15 = sbr.rel (0) target = $region5
  $region4: #{stock_network_forward.1} parent=0 // pred_region
    _
  $region5: #{stock_network_forward.1} parent=0 // pred_fallthru
    _
  // Predicated region
  $region6: #{stock_network_forward.1} parent=0 // pred_check
    _
  $region7: #{stock_network_forward.1} parent=0 // pred_check_branch
    %17 = sbr.rel (0) target = $region9
  $region8: #{stock_network_forward.1} parent=0 // pred_region
    _
  $region9: #{stock_network_forward.1} parent=0 // pred_fallthru
    _
  // Predicated region
  $region10: #{stock_network_forward.1} parent=0 // pred_check
    _
  $region11: #{stock_network_forward.1} parent=0 // pred_check_branch
    %19 = sbr.rel (0) target = $region13
  $region12: #{stock_network_forward.1} parent=0 // pred_region
    _
  $region13: #{stock_network_forward.1} parent=0 // pred_fallthru
    _
  // Predicated region
  $region14: #{stock_network_forward.1} parent=0 // pred_check
    _
  $region15: #{stock_network_forward.1} parent=0 // pred_check_branch
    %21 = sbr.rel (0) target = $region17
  $region16: #{stock_network_forward.1} parent=0 // pred_region
    _
  $region17: #{stock_network_forward.1} parent=0 // pred_fallthru
    _
  // Predicated region
  $region18: #{stock_network_forward.1} parent=0 // pred_check
    _
  $region19: #{stock_network_forward.1} parent=0 // pred_check_branch
    %23 = sbr.rel (0) target = $region21
  $region20: #{stock_network_forward.1} parent=0 // pred_region
    _
  $region21: #{stock_network_forward.1} parent=0 // pred_fallthru
    _
  // Predicated region
  $region22: #{stock_network_forward.1} parent=0 // pred_check
    _
  $region23: #{stock_network_forward.1} parent=0 // pred_check_branch
    %25 = sbr.rel (0) target = $region25
  $region24: #{stock_network_forward.1} parent=0 // pred_region
    _
  $region25: #{stock_network_forward.1} parent=0 // pred_fallthru
    _
  // Predicated region
  $region26: #{stock_network_forward.1} parent=0 // pred_check
    _
  $region27: #{stock_network_forward.1} parent=0 // pred_check_branch
    %27 = sbr.rel (0) target = $region29
  $region28: #{stock_network_forward.1} parent=0 // pred_region
    _
  $region29: #{stock_network_forward.1} parent=0 // pred_fallthru
    _
  // Predicated region
  $region30: #{stock_network_forward.1} parent=0 // pred_check
    _
  $region31: #{stock_network_forward.1} parent=0 // pred_check_branch
    %29 = sbr.rel (0) target = $region33
  $region32: #{stock_network_forward.1} parent=0 // pred_region
    _
  $region33: #{stock_network_forward.1} parent=0 // pred_fallthru
    _
  // Predicated region
  $region34: #{stock_network_forward.1} parent=0 // pred_check
    _
  $region35: #{stock_network_forward.1} parent=0 // pred_check_branch
    %31 = sbr.rel (0) target = $region37
  $region36: #{stock_network_forward.1} parent=0 // pred_region
    _
  $region37: #{stock_network_forward.1} parent=0 // pred_fallthru
    _
  %v33 = vld [vmem:[%s0] sm:$0xf]
  %v34 = vld [vmem:[%s1] sm:$0xf]
  %v35 = vld [vmem:[%s2] sm:$0x1]
  %v37 = vlaneseq
  %v38 = vshrl.u32 %v37, 7
  %v39 = vsub.s32 0, %v38
  %v40 = vrot.slane %v35, %v39
  %vm42 = vcmask 64512
  %v44 = vsel %vm42, %v33, 0
  %vm46 = vcmask 1043456
  %v48 = vsel %vm46, %v34, 0
  %50 = vmatprep.subr.bf16.mxu0 0
  %51 = vmatpush1.bf16.msra.mxu0 0
  %52 = vmatprep.subr.bf16.mxu0 0
  %53 = vmatpush1.bf16.msra.mxu0 0
  %54 = vmatprep.subr.bf16.mxu0 0
  %55 = vmatpush1.bf16.msra.mxu0 0
  %56 = vmatprep.subr.bf16.mxu0 0
  %57 = vmatpush1.bf16.msra.mxu0 0
  %58 = vmatprep.subr.bf16.mxu0 0
  %59 = vmatpush1.bf16.msra.mxu0 0
  %60 = vmatprep.subr.bf16.mxu0 0
  %61 = vmatpush1.bf16.msra.mxu0 0
  %62 = vmatprep.subr.bf16.mxu0 0
  %63 = vmatpush1.bf16.msra.mxu0 0
  %64 = vmatprep.subr.bf16.mxu0 0
  %65 = vmatpush1.bf16.msra.mxu0 %v48
  %66 = vmatprep.subr.bf16.mxu0 0
  %67 = vmatpush2.bf16.msra.mxu0 0
  %68 = vmatprep.subr.bf16.mxu0 0
  %69 = vmatpush2.bf16.msra.mxu0 0
  %70 = vmatprep.subr.bf16.mxu0 0
  %71 = vmatpush2.bf16.msra.mxu0 0
  %72 = vmatprep.subr.bf16.mxu0 0
  %73 = vmatpush2.bf16.msra.mxu0 0
  %74 = vmatprep.subr.bf16.mxu0 0
  %75 = vmatpush2.bf16.msra.mxu0 0
  %76 = vmatprep.subr.bf16.mxu0 0
  %77 = vmatpush2.bf16.msra.mxu0 0
  %78 = vmatprep.subr.bf16.mxu0 0
  %79 = vmatpush2.bf16.msra.mxu0 0
  %80 = vmatprep.subr.bf16.mxu0 0
  %81 = vmatpush2.bf16.msra.mxu0 0
  %82 = vmatprep.mubr.bf16.mxu0 0
  %83 = vmatmul.mubr.bf16.gmra.mxu0 %v44
  %v84 = vpop.f32.mrf.mxu0
  %v85 = vadd.f32 %v40, %v84
  %v86 = vpop.f32.mrf.mxu0
  %v87 = vpop.f32.mrf.mxu0
  %v88 = vpop.f32.mrf.mxu0
  %89 = vdwg.mxu0
  %v90 = vmax.f32 %v85, 0.0
  %v91 = vpack.c.bf16 %v90, %v90
  %v92 = vld [vmem:[%s3] sm:$0xf]
  %v93 = vld [vmem:[%s3 + $0x4] sm:$0xf]
  %v94 = vld [vmem:[%s3 + $0x8] sm:$0xf]
  %v95 = vld [vmem:[%s3 + $0xc] sm:$0xf]
  %v96 = vld [vmem:[%s3 + $0x10] sm:$0xf]
  %v97 = vld [vmem:[%s3 + $0x14] sm:$0xf]
  %v98 = vld [vmem:[%s3 + $0x18] sm:$0xf]
  %v99 = vld [vmem:[%s3 + $0x1c] sm:$0xf]
  %v100 = vld [vmem:[%s3 + $0x20] sm:$0xf]
  %v101 = vld [vmem:[%s3 + $0x24] sm:$0xf]
  %v102 = vld [vmem:[%s3 + $0x28] sm:$0xf]
  %v103 = vld [vmem:[%s3 + $0x2c] sm:$0xf]
  %v104 = vld [vmem:[%s3 + $0x30] sm:$0xf]
  %v105 = vld [vmem:[%s3 + $0x34] sm:$0xf]
  %v106 = vld [vmem:[%s3 + $0x38] sm:$0xf]
  %v107 = vld [vmem:[%s3 + $0x3c] sm:$0xf]
  %v108 = vld [vmem:[%s4] sm:$0x1]
  %v110 = vlaneseq
  %v111 = vshrl.u32 %v110, 7
  %v112 = vsub.s32 0, %v111
  %v113 = vrot.slane %v108, %v112
  %v131 = vunpack.c.l.b16 %v92
  %v132 = vunpack.c.l.b16 %v93
  %v133 = vunpack.c.l.b16 %v94
  %v134 = vunpack.c.l.b16 %v95
  %v135 = vunpack.c.l.b16 %v96
  %v136 = vunpack.c.l.b16 %v97
  %v137 = vunpack.c.l.b16 %v98
  %v138 = vunpack.c.l.b16 %v99
  %v139 = vunpack.c.l.b16 %v100
  %v140 = vunpack.c.l.b16 %v101
  %v141 = vunpack.c.l.b16 %v102
  %v142 = vunpack.c.l.b16 %v103
  %v143 = vunpack.c.l.b16 %v104
  %v144 = vunpack.c.l.b16 %v105
  %v145 = vunpack.c.l.b16 %v106
  %v146 = vunpack.c.l.b16 %v107
  %v147 = vpack.c.b16 %v132, %v131
  %v148 = vpack.c.b16 %v134, %v133
  %v149 = vpack.c.b16 %v136, %v135
  %v150 = vpack.c.b16 %v138, %v137
  %v151 = vpack.c.b16 %v140, %v139
  %v152 = vpack.c.b16 %v142, %v141
  %v153 = vpack.c.b16 %v144, %v143
  %v154 = vpack.c.b16 %v146, %v145
  %163 = vmatprep.subr.bf16.mxu0 0
  %164 = vmatpush1.bf16.msra.mxu0 %v154
  %165 = vmatprep.subr.bf16.mxu0 0
  %166 = vmatpush1.bf16.msra.mxu0 %v153
  %167 = vmatprep.subr.bf16.mxu0 0
  %168 = vmatpush1.bf16.msra.mxu0 %v152
  %169 = vmatprep.subr.bf16.mxu0 0
  %170 = vmatpush1.bf16.msra.mxu0 %v151
  %171 = vmatprep.subr.bf16.mxu0 0
  %172 = vmatpush1.bf16.msra.mxu0 %v150
  %173 = vmatprep.subr.bf16.mxu0 0
  %174 = vmatpush1.bf16.msra.mxu0 %v149
  %175 = vmatprep.subr.bf16.mxu0 0
  %176 = vmatpush1.bf16.msra.mxu0 %v148
  %177 = vmatprep.subr.bf16.mxu0 0
  %178 = vmatpush1.bf16.msra.mxu0 %v147
  %179 = vmatprep.subr.bf16.mxu0 0
  %180 = vmatpush2.bf16.msra.mxu0 0
  %181 = vmatprep.subr.bf16.mxu0 0
  %182 = vmatpush2.bf16.msra.mxu0 0
  %183 = vmatprep.subr.bf16.mxu0 0
  %184 = vmatpush2.bf16.msra.mxu0 0
  %185 = vmatprep.subr.bf16.mxu0 0
  %186 = vmatpush2.bf16.msra.mxu0 0
  %187 = vmatprep.subr.bf16.mxu0 0
  %188 = vmatpush2.bf16.msra.mxu0 0
  %189 = vmatprep.subr.bf16.mxu0 0
  %190 = vmatpush2.bf16.msra.mxu0 0
  %191 = vmatprep.subr.bf16.mxu0 0
  %192 = vmatpush2.bf16.msra.mxu0 0
  %193 = vmatprep.subr.bf16.mxu0 0
  %194 = vmatpush2.bf16.msra.mxu0 0
  %195 = vmatprep.mubr.bf16.mxu0 0
  %196 = vmatmul.mubr.bf16.gmra.mxu0 %v91
  %v197 = vpop.f32.mrf.mxu0
  %v198 = vadd.f32 %v113, %v197
  %v199 = vpop.f32.mrf.mxu0
  %v200 = vpop.f32.mrf.mxu0
  %v201 = vpop.f32.mrf.mxu0
  %202 = vdwg.mxu0
  %v203 = vmax.f32 %v198, 0.0
  %v204 = vpack.c.bf16 %v203, %v203
  %v205 = vld [vmem:[%s5] sm:$0xf]
  %v206 = vld [vmem:[%s5 + $0x4] sm:$0xf]
  %v207 = vld [vmem:[%s5 + $0x8] sm:$0xf]
  %v208 = vld [vmem:[%s5 + $0xc] sm:$0xf]
  %v209 = vld [vmem:[%s5 + $0x10] sm:$0xf]
  %v210 = vld [vmem:[%s5 + $0x14] sm:$0xf]
  %v211 = vld [vmem:[%s5 + $0x18] sm:$0xf]
  %v212 = vld [vmem:[%s5 + $0x1c] sm:$0xf]
  %v213 = vld [vmem:[%s5 + $0x20] sm:$0xf]
  %v214 = vld [vmem:[%s5 + $0x24] sm:$0xf]
  %v215 = vld [vmem:[%s5 + $0x28] sm:$0xf]
  %v216 = vld [vmem:[%s5 + $0x2c] sm:$0xf]
  %v217 = vld [vmem:[%s5 + $0x30] sm:$0xf]
  %v218 = vld [vmem:[%s5 + $0x34] sm:$0xf]
  %v219 = vld [vmem:[%s5 + $0x38] sm:$0xf]
  %v220 = vld [vmem:[%s5 + $0x3c] sm:$0xf]
  %v221 = vld [vmem:[%s6] sm:$0x1]
  %v223 = vlaneseq
  %v224 = vshrl.u32 %v223, 7
  %v225 = vsub.s32 0, %v224
  %v226 = vrot.slane %v221, %v225
  %v244 = vunpack.c.l.b16 %v205
  %v245 = vunpack.c.l.b16 %v206
  %v246 = vunpack.c.l.b16 %v207
  %v247 = vunpack.c.l.b16 %v208
  %v248 = vunpack.c.l.b16 %v209
  %v249 = vunpack.c.l.b16 %v210
  %v250 = vunpack.c.l.b16 %v211
  %v251 = vunpack.c.l.b16 %v212
  %v252 = vunpack.c.l.b16 %v213
  %v253 = vunpack.c.l.b16 %v214
  %v254 = vunpack.c.l.b16 %v215
  %v255 = vunpack.c.l.b16 %v216
  %v256 = vunpack.c.l.b16 %v217
  %v257 = vunpack.c.l.b16 %v218
  %v258 = vunpack.c.l.b16 %v219
  %v259 = vunpack.c.l.b16 %v220
  %v260 = vpack.c.b16 %v245, %v244
  %v261 = vpack.c.b16 %v247, %v246
  %v262 = vpack.c.b16 %v249, %v248
  %v263 = vpack.c.b16 %v251, %v250
  %v264 = vpack.c.b16 %v253, %v252
  %v265 = vpack.c.b16 %v255, %v254
  %v266 = vpack.c.b16 %v257, %v256
  %v267 = vpack.c.b16 %v259, %v258
  %276 = vmatprep.subr.bf16.mxu0 0
  %277 = vmatpush1.bf16.msra.mxu0 %v267
  %278 = vmatprep.subr.bf16.mxu0 0
  %279 = vmatpush1.bf16.msra.mxu0 %v266
  %280 = vmatprep.subr.bf16.mxu0 0
  %281 = vmatpush1.bf16.msra.mxu0 %v265
  %282 = vmatprep.subr.bf16.mxu0 0
  %283 = vmatpush1.bf16.msra.mxu0 %v264
  %284 = vmatprep.subr.bf16.mxu0 0
  %285 = vmatpush1.bf16.msra.mxu0 %v263
  %286 = vmatprep.subr.bf16.mxu0 0
  %287 = vmatpush1.bf16.msra.mxu0 %v262
  %288 = vmatprep.subr.bf16.mxu0 0
  %289 = vmatpush1.bf16.msra.mxu0 %v261
  %290 = vmatprep.subr.bf16.mxu0 0
  %291 = vmatpush1.bf16.msra.mxu0 %v260
  %292 = vmatprep.subr.bf16.mxu0 0
  %293 = vmatpush2.bf16.msra.mxu0 0
  %294 = vmatprep.subr.bf16.mxu0 0
  %295 = vmatpush2.bf16.msra.mxu0 0
  %296 = vmatprep.subr.bf16.mxu0 0
  %297 = vmatpush2.bf16.msra.mxu0 0
  %298 = vmatprep.subr.bf16.mxu0 0
  %299 = vmatpush2.bf16.msra.mxu0 0
  %300 = vmatprep.subr.bf16.mxu0 0
  %301 = vmatpush2.bf16.msra.mxu0 0
  %302 = vmatprep.subr.bf16.mxu0 0
  %303 = vmatpush2.bf16.msra.mxu0 0
  %304 = vmatprep.subr.bf16.mxu0 0
  %305 = vmatpush2.bf16.msra.mxu0 0
  %306 = vmatprep.subr.bf16.mxu0 0
  %307 = vmatpush2.bf16.msra.mxu0 0
  %308 = vmatprep.mubr.bf16.mxu0 0
  %309 = vmatmul.mubr.bf16.gmra.mxu0 %v204
  %v310 = vpop.f32.mrf.mxu0
  %v311 = vadd.f32 %v226, %v310
  %v312 = vpop.f32.mrf.mxu0
  %v313 = vpop.f32.mrf.mxu0
  %v314 = vpop.f32.mrf.mxu0
  %315 = vdwg.mxu0
  %v316 = vmax.f32 %v311, 0.0
  %v317 = vpack.c.bf16 %v316, %v316
  %v318 = vld [vmem:[%s7] sm:$0xf]
  %v319 = vld [vmem:[%s7 + $0x4] sm:$0xf]
  %v320 = vld [vmem:[%s7 + $0x8] sm:$0xf]
  %v321 = vld [vmem:[%s7 + $0xc] sm:$0xf]
  %v322 = vld [vmem:[%s7 + $0x10] sm:$0xf]
  %v323 = vld [vmem:[%s7 + $0x14] sm:$0xf]
  %v324 = vld [vmem:[%s7 + $0x18] sm:$0xf]
  %v325 = vld [vmem:[%s7 + $0x1c] sm:$0xf]
  %v326 = vld [vmem:[%s7 + $0x20] sm:$0xf]
  %v327 = vld [vmem:[%s7 + $0x24] sm:$0xf]
  %v328 = vld [vmem:[%s7 + $0x28] sm:$0xf]
  %v329 = vld [vmem:[%s7 + $0x2c] sm:$0xf]
  %v330 = vld [vmem:[%s7 + $0x30] sm:$0xf]
  %v331 = vld [vmem:[%s7 + $0x34] sm:$0xf]
  %v332 = vld [vmem:[%s7 + $0x38] sm:$0xf]
  %v333 = vld [vmem:[%s7 + $0x3c] sm:$0xf]
  %v334 = vld [vmem:[%s8] sm:$0x1]
  %v336 = vlaneseq
  %v337 = vshrl.u32 %v336, 7
  %v338 = vsub.s32 0, %v337
  %v339 = vrot.slane %v334, %v338
  %v357 = vunpack.c.l.b16 %v318
  %v358 = vunpack.c.l.b16 %v319
  %v359 = vunpack.c.l.b16 %v320
  %v360 = vunpack.c.l.b16 %v321
  %v361 = vunpack.c.l.b16 %v322
  %v362 = vunpack.c.l.b16 %v323
  %v363 = vunpack.c.l.b16 %v324
  %v364 = vunpack.c.l.b16 %v325
  %v365 = vunpack.c.l.b16 %v326
  %v366 = vunpack.c.l.b16 %v327
  %v367 = vunpack.c.l.b16 %v328
  %v368 = vunpack.c.l.b16 %v329
  %v369 = vunpack.c.l.b16 %v330
  %v370 = vunpack.c.l.b16 %v331
  %v371 = vunpack.c.l.b16 %v332
  %v372 = vunpack.c.l.b16 %v333
  %v373 = vpack.c.b16 %v358, %v357
  %v374 = vpack.c.b16 %v360, %v359
  %v375 = vpack.c.b16 %v362, %v361
  %v376 = vpack.c.b16 %v364, %v363
  %v377 = vpack.c.b16 %v366, %v365
  %v378 = vpack.c.b16 %v368, %v367
  %v379 = vpack.c.b16 %v370, %v369
  %v380 = vpack.c.b16 %v372, %v371
  %389 = vmatprep.subr.bf16.mxu0 0
  %390 = vmatpush1.bf16.msra.mxu0 %v380
  %391 = vmatprep.subr.bf16.mxu0 0
  %392 = vmatpush1.bf16.msra.mxu0 %v379
  %393 = vmatprep.subr.bf16.mxu0 0
  %394 = vmatpush1.bf16.msra.mxu0 %v378
  %395 = vmatprep.subr.bf16.mxu0 0
  %396 = vmatpush1.bf16.msra.mxu0 %v377
  %397 = vmatprep.subr.bf16.mxu0 0
  %398 = vmatpush1.bf16.msra.mxu0 %v376
  %399 = vmatprep.subr.bf16.mxu0 0
  %400 = vmatpush1.bf16.msra.mxu0 %v375
  %401 = vmatprep.subr.bf16.mxu0 0
  %402 = vmatpush1.bf16.msra.mxu0 %v374
  %403 = vmatprep.subr.bf16.mxu0 0
  %404 = vmatpush1.bf16.msra.mxu0 %v373
  %405 = vmatprep.subr.bf16.mxu0 0
  %406 = vmatpush2.bf16.msra.mxu0 0
  %407 = vmatprep.subr.bf16.mxu0 0
  %408 = vmatpush2.bf16.msra.mxu0 0
  %409 = vmatprep.subr.bf16.mxu0 0
  %410 = vmatpush2.bf16.msra.mxu0 0
  %411 = vmatprep.subr.bf16.mxu0 0
  %412 = vmatpush2.bf16.msra.mxu0 0
  %413 = vmatprep.subr.bf16.mxu0 0
  %414 = vmatpush2.bf16.msra.mxu0 0
  %415 = vmatprep.subr.bf16.mxu0 0
  %416 = vmatpush2.bf16.msra.mxu0 0
  %417 = vmatprep.subr.bf16.mxu0 0
  %418 = vmatpush2.bf16.msra.mxu0 0
  %419 = vmatprep.subr.bf16.mxu0 0
  %420 = vmatpush2.bf16.msra.mxu0 0
  %421 = vmatprep.mubr.bf16.mxu0 0
  %422 = vmatmul.mubr.bf16.gmra.mxu0 %v317
  %v423 = vpop.f32.mrf.mxu0
  %v424 = vadd.f32 %v339, %v423
  %v425 = vpop.f32.mrf.mxu0
  %v426 = vpop.f32.mrf.mxu0
  %v427 = vpop.f32.mrf.mxu0
  %428 = vdwg.mxu0
  %v429 = vlaneseq
  %v430 = vand.u32 %v429, 127
  %vm431 = vcmp.ge.s32.totalorder %v430, 2
  %v432 = vmul.f32 %v424, 1.442695
  %v433 = vpow.pop %v432
  %v434 = vsel %vm431, %v433, %v424
  %vm435 = vcmask 31744
  %436 = vst.msk [vmem:[%s9] sm:$0xff] %vm435, %v434
  // Predicated region
  $region38: #{stock_network_forward.1} parent=0 // pred_check
    _
  $region39: #{stock_network_forward.1} parent=0 // pred_check_branch
    %438 = sbr.rel (0) target = $region41
  $region40: #{stock_network_forward.1} parent=0 // pred_region
    _
  $region41: #{stock_network_forward.1} parent=0 // pred_fallthru
    _
  // Predicated region
  $region42: #{stock_network_forward.1} parent=0 // pred_check
    _
  $region43: #{stock_network_forward.1} parent=0 // pred_check_branch
    %440 = sbr.rel (0) target = $region45
  $region44: #{stock_network_forward.1} parent=0 // pred_region
    _
  $region45: #{stock_network_forward.1} parent=0 // pred_fallthru
    _

</llo_original>
